<compile_context>
chip_gen: v6e
topology: v6e:2x2x1
jax: 0.10.0
libtpu: 0.0.40
codegen_flags: <defaults>
</compile_context>

<pallas_src>
import functools

import jax
import jax.numpy as jnp
from jax.experimental import pallas as pl
from jax.experimental.pallas import tpu as pltpu


def _round_up(v, m):
    return ((v + m - 1) // m) * m


def _gcn_kernel(tk, nk, nzf_ref, amap_ref, a_ref, x_ref, w_ref, b_ref,
                p_ref, dr_ref, o_ref, ax_acc):
    # nzf_ref  : [ni*nk] int32 SMEM  per-tile nonzero flags (scalar prefetch)
    # amap_ref : [ni*nk] int32 SMEM  snapped adjacency col-block indices
    # a_ref    : [tm, tk]  int8      raw (A + I) adjacency tile
    # x_ref    : [N_pad, F_pad]      D^-1/2-scaled features, VMEM resident
    # w_ref    : [F_pad, H_pad]      weight (compute dtype)
    # b_ref    : [1, H_pad]  f32     bias
    # p_ref    : [B_pad, tm]         one-hot pooling tile (compute dtype)
    # dr_ref   : [tm, 1]     f32     row-side D^-1/2 for this row tile
    # o_ref    : [B_pad, H_pad] f32  per-row-tile partial pooled output
    # ax_acc   : [tm, F_pad] f32     scratch accumulator for A @ (D^-1/2 X)
    i = pl.program_id(0)
    k = pl.program_id(1)

    @pl.when(k == 0)
    def _init():
        ax_acc[...] = jnp.zeros_like(ax_acc)

    # Zero adjacency tiles: compute skipped here, DMA skipped via amap snapping.
    @pl.when(nzf_ref[i * nk + k] != 0)
    def _accumulate():
        off = pl.multiple_of(k * tk, tk)
        xs = x_ref[pl.ds(off, tk), :]
        ax_acc[...] += jnp.dot(a_ref[...].astype(xs.dtype), xs,
                               preferred_element_type=jnp.float32)

    @pl.when(k == nk - 1)
    def _finalize():
        # Row-side D^-1/2 (column side already folded into X in the wrapper).
        axn = ax_acc[...] * dr_ref[...]
        h = jnp.dot(axn.astype(w_ref.dtype), w_ref[...],
                    preferred_element_type=jnp.float32)
        h = jnp.maximum(h + b_ref[...], 0.0)
        # NOTE: padded node rows give h = relu(bias) != 0; correctness relies
        # on the pool columns for padded nodes (batch id -1) being all-zero.
        o_ref[...] = jnp.dot(p_ref[...], h.astype(p_ref.dtype),
                             preferred_element_type=jnp.float32)


def gcn_encoder_forward(x, edge_index, batch_indeces, weight, bias, num_graphs,
                        *, compute_dtype=jnp.bfloat16, tm=None, tk=None):
    """Forward pass of GCNEncoder (GCNConv -> ReLU -> global_add_pool).

    x:             [N, F] float32 node features
    edge_index:    [2, E] int32  (row 0 = source, row 1 = target)
    batch_indeces: [N]    int32  graph id per node
    weight:        [F, H] float32
    bias:          [H]    float32
    returns:       [num_graphs, H] float32
    """
    N, F = x.shape
    H = weight.shape[1]

    N_pad = _round_up(max(N, 128), 128)
    F_pad = _round_up(max(F, 128), 128)
    H_pad = _round_up(max(H, 128), 128)
    B_pad = _round_up(max(num_graphs, 8), 8)

    # Tile sizes: largest divisor of N_pad (amortizes per-step overhead; the
    # kernel is memory-bound so the main requirement is just "big enough").
    if tm is None:
        tm = next(c for c in (512, 256, 128) if N_pad % c == 0)
    if tk is None:
        tk = next(c for c in (1024, 512, 256, 128) if N_pad % c == 0)
    assert tm % 128 == 0 and tk % 128 == 0
    assert N_pad % tm == 0 and N_pad % tk == 0
    ni = N_pad // tm
    nk = N_pad // tk

    src = edge_index[0].astype(jnp.int32)
    dst = edge_index[1].astype(jnp.int32)
    node = jnp.arange(N, dtype=jnp.int32)

    # Raw (A + I) adjacency scattered directly into the padded int8 buffer
    # (messages source -> target: A[target, source] += 1). Values stay exact.
    adj_i8 = jnp.zeros((N_pad, N_pad), jnp.int8)
    adj_i8 = adj_i8.at[dst, src].add(jnp.int8(1))
    adj_i8 = adj_i8.at[node, node].add(jnp.int8(1))

    # Degrees from an edge scatter (no dense N^2 row-sum). Matches the row sums
    # of (A + I) used by GCNConv's symmetric normalization.
    deg = jnp.zeros((N,), jnp.float32).at[dst].add(1.0) + 1.0
    dinv = jax.lax.rsqrt(jnp.maximum(deg, 1e-12))
    dinv_pad = jnp.zeros((N_pad,), jnp.float32).at[:N].set(dinv)

    # Column-side D^-1/2 folded into X once (padded rows have dinv = 0).
    x_pad = jnp.zeros((N_pad, F_pad), jnp.float32).at[:N, :F].set(x)
    x_c = (dinv_pad[:, None] * x_pad).astype(compute_dtype)

    w_c = (jnp.zeros((F_pad, H_pad), jnp.float32)
           .at[:F, :H].set(weight).astype(compute_dtype))
    b_pad = jnp.zeros((1, H_pad), jnp.float32).at[0, :H].set(bias)
    dr = dinv_pad.reshape(N_pad, 1)          # f32 row-side scale

    # One-hot pooling matrix; padded nodes get batch id -1 and match nothing,
    # which zeroes their relu(bias) rows out of the pooled result.
    batch_pad = jnp.full((N_pad,), -1, jnp.int32).at[:N].set(
        batch_indeces.astype(jnp.int32))
    pool_c = (jnp.arange(B_pad, dtype=jnp.int32)[:, None]
              == batch_pad[None, :]).astype(compute_dtype)

    # Per-tile nonzero flags by scattering edge (and self-loop) block coords.
    nz2 = jnp.zeros((ni, nk), jnp.int32)
    nz2 = nz2.at[dst // tm, src // tk].max(1)
    nz2 = nz2.at[node // tm, node // tk].max(1)
    # Snapped column-block index: zero tiles map to the most recent nonzero
    # block (or the first nonzero block for leading zeros), so the pipeline
    # issues no new adjacency DMA for them.
    karr = jnp.arange(nk, dtype=jnp.int32)
    cand = jnp.where(nz2 > 0, karr[None, :], -1)
    last_nz = jax.lax.cummax(cand, axis=1)
    first_nz = jnp.argmax(nz2 > 0, axis=1).astype(jnp.int32)
    amap = jnp.where(last_nz >= 0, last_nz, first_nz[:, None]).astype(jnp.int32)
    nzf = nz2.reshape(-1)          # 1D SMEM arrays (no lane padding blowup)
    amap = amap.reshape(-1)

    kernel = functools.partial(_gcn_kernel, tk, nk)

    grid_spec = pltpu.PrefetchScalarGridSpec(
        num_scalar_prefetch=2,
        grid=(ni, nk),                                   # reduction axis last
        in_specs=[
            # adjacency tile; data-dependent (snapped) column-block index
            pl.BlockSpec((tm, tk), lambda i, k, nzf, amap: (i, amap[i * nk + k])),
            # X fully VMEM resident (DMA'd once)
            pl.BlockSpec((N_pad, F_pad), lambda i, k, nzf, amap: (0, 0)),
            pl.BlockSpec((F_pad, H_pad), lambda i, k, nzf, amap: (0, 0)),   # W
            pl.BlockSpec((1, H_pad), lambda i, k, nzf, amap: (0, 0)),       # bias
            pl.BlockSpec((B_pad, tm), lambda i, k, nzf, amap: (0, i)),      # pool
            pl.BlockSpec((tm, 1), lambda i, k, nzf, amap: (i, 0)),          # dinv row
        ],
        # Per-row-tile partial pooled outputs -> row axis can be "parallel".
        out_specs=pl.BlockSpec((None, B_pad, H_pad),
                               lambda i, k, nzf, amap: (i, 0, 0)),
        scratch_shapes=[pltpu.VMEM((tm, F_pad), jnp.float32)],
    )

    partials = pl.pallas_call(
        kernel,
        out_shape=jax.ShapeDtypeStruct((ni, B_pad, H_pad), jnp.float32),
        grid_spec=grid_spec,
        compiler_params=pltpu.CompilerParams(
            dimension_semantics=("parallel", "arbitrary"),
            vmem_limit_bytes=32 * 1024 * 1024,
        ),
    )(nzf, amap, adj_i8, x_c, w_c, b_pad, pool_c, dr)

    # Tiny XLA reduction over row-tile partials (a few KB).
    out = jnp.sum(partials, axis=0)
    return out[:num_graphs, :H]


def _reference(x, edge_index, batch_indeces, weight, bias, num_graphs):
    N = x.shape[0]
    src, dst = edge_index[0], edge_index[1]
    adj = jnp.zeros((N, N), dtype=jnp.float32).at[dst, src].add(1.0)
    adj = adj + jnp.eye(N, dtype=jnp.float32)
    deg = jnp.sum(adj, axis=1)
    dinv = jax.lax.rsqrt(jnp.maximum(deg, 1e-12))
    a_hat = dinv[:, None] * adj * dinv[None, :]
    h = jnp.maximum(a_hat @ (x @ weight) + bias[None, :], 0.0)
    return jax.ops.segment_sum(h, batch_indeces, num_segments=num_graphs)


def _make_ring_graphs(num_graphs, nodes_per_graph):
    edges = []
    for g in range(num_graphs):
        base = g * nodes_per_graph
        for i in range(nodes_per_graph):
            a = base + i
            b = base + (i + 1) % nodes_per_graph
            edges.append((a, b))
            edges.append((b, a))
    edge_index = jnp.array(edges, dtype=jnp.int32).T                   # [2, E]
    batch = jnp.repeat(jnp.arange(num_graphs, dtype=jnp.int32),
                       nodes_per_graph)                                # [N]
    return edge_index, batch


if __name__ == "__main__":
    F, H = 8, 32
    limit = (6.0 / (F + H)) ** 0.5
    key = jax.random.PRNGKey(0)

    # (num_graphs, nodes_per_graph, tm, tk)
    #  - tiny case: single (128,128) tile, grid (1,1)
    #  - 256 nodes, tm=tk=128 -> grid (2,2); off-diagonal tiles are all-zero
    #    (exercises the compute skip + snapped-index DMA skip)
    #  - 512 nodes, tm=128, tk=256 -> grid (4,2); rows whose nonzero block is
    #    k=1 exercise the leading-zero snap in the data-dependent index_map.
    test_cases = [
        (2, 8, None, None),
        (2, 128, 128, 128),
        (4, 128, 128, 256),
    ]

    for (B, npg, tm, tk) in test_cases:
        N = B * npg
        key, kx, kw, kb = jax.random.split(key, 4)
        x = jax.random.normal(kx, (N, F), dtype=jnp.float32)
        weight = jax.random.uniform(kw, (F, H), dtype=jnp.float32,
                                    minval=-limit, maxval=limit)
        bias = 0.1 * jax.random.normal(kb, (H,), dtype=jnp.float32)
        edge_index, batch = _make_ring_graphs(B, npg)

        ref = _reference(x, edge_index, batch, weight, bias, B)

        for dtype, atol, rtol in [(jnp.float32, 1e-4, 1e-4),
                                  (jnp.bfloat16, 5e-2, 5e-2)]:
            out = gcn_encoder_forward(x, edge_index, batch, weight, bias, B,
                                      compute_dtype=dtype, tm=tm, tk=tk)
            out = jax.block_until_ready(out)
            assert out.shape == (B, H)
            assert jnp.allclose(out, ref, atol=atol, rtol=rtol), (
                f"mismatch: N={N} dtype={dtype}")

    print("KERNEL_OK")
</pallas_src>

<mosaic_0001>
module attributes {stable_mosaic.version = 11 : i64} {
  func.func @_gcn_kernel(%arg0: i32, %arg1: i32, %arg2: memref<1xi32, #tpu.memory_space<smem>>, %arg3: memref<1xi32, #tpu.memory_space<smem>>, %arg4: memref<128x128xi8, #tpu.memory_space<vmem>>, %arg5: memref<128x128xf32, #tpu.memory_space<vmem>>, %arg6: memref<128x128xf32, #tpu.memory_space<vmem>>, %arg7: memref<1x128xf32, #tpu.memory_space<vmem>>, %arg8: memref<8x128xf32, #tpu.memory_space<vmem>>, %arg9: memref<128x1xf32, #tpu.memory_space<vmem>>, %arg10: memref<1x8x128xf32, #tpu.memory_space<vmem>>, %arg11: memref<128x128xf32, #tpu.memory_space<vmem>>) attributes {dimension_semantics = [#tpu.dimension_semantics<parallel>, #tpu.dimension_semantics<arbitrary>], iteration_bounds = array<i64: 1, 1>, scalar_prefetch = 2 : i64, scratch_operands = 1 : i64, tpu.core_type = #tpu.core_type<tc>, window_params = [{transform_indices = @transform_0, window_bounds = array<i64: 128, 128>}, {pipeline_mode = #tpu.pipeline_mode<synchronous>, transform_indices = @transform_1, window_bounds = array<i64: 128, 128>}, {pipeline_mode = #tpu.pipeline_mode<synchronous>, transform_indices = @transform_2, window_bounds = array<i64: 128, 128>}, {pipeline_mode = #tpu.pipeline_mode<synchronous>, transform_indices = @transform_3, window_bounds = array<i64: 1, 128>}, {transform_indices = @transform_4, window_bounds = array<i64: 8, 128>}, {transform_indices = @transform_5, window_bounds = array<i64: 128, 1>}, {transform_indices = @transform_6, window_bounds = array<i64: 1, 8, 128>}]} {
    %c0_i32 = arith.constant 0 : i32
    %0 = arith.cmpi eq, %arg1, %c0_i32 : i32
    %1 = arith.extui %0 : i1 to i32
    %c0_i32_0 = arith.constant 0 : i32
    %2 = arith.cmpi ne, %1, %c0_i32_0 : i32
    scf.if %2 {
      %cst = arith.constant 0.000000e+00 : f32
      %13 = vector.broadcast %cst : f32 to vector<128x128xf32>
      %c0 = arith.constant 0 : index
      %c0_5 = arith.constant 0 : index
      %14 = vector.load %arg11[%c0, %c0_5] : memref<128x128xf32, #tpu.memory_space<vmem>>, vector<128x128xf32>
      tpu.vector_store %arg11[%c0, %c0_5], %13 {strides = array<i32>} : memref<128x128xf32, #tpu.memory_space<vmem>>, vector<128x128xf32>,
    } else {
    }
    %c1_i32 = arith.constant 1 : i32
    %3 = arith.muli %arg0, %c1_i32 : i32
    %4 = arith.addi %3, %arg1 : i32
    %5 = arith.index_cast %4 : i32 to index
    %6 = memref.load %arg2[%5] : memref<1xi32, #tpu.memory_space<smem>>
    %c0_i32_1 = arith.constant 0 : i32
    %7 = arith.cmpi ne, %6, %c0_i32_1 : i32
    %8 = arith.extui %7 : i1 to i32
    %c0_i32_2 = arith.constant 0 : i32
    %9 = arith.cmpi ne, %8, %c0_i32_2 : i32
    scf.if %9 {
      %c128_i32 = arith.constant 128 : i32
      %13 = arith.muli %arg1, %c128_i32 : i32
      %14 = tpu.assume_multiple %13, 128 : i32
      %15 = arith.index_cast %14 : i32 to index
      %c0 = arith.constant 0 : index
      %16 = vector.load %arg5[%15, %c0] : memref<128x128xf32, #tpu.memory_space<vmem>>, vector<128x128xf32>
      %c0_5 = arith.constant 0 : index
      %c0_6 = arith.constant 0 : index
      %17 = vector.load %arg11[%c0_5, %c0_6] : memref<128x128xf32, #tpu.memory_space<vmem>>, vector<128x128xf32>
      %c0_7 = arith.constant 0 : index
      %c0_8 = arith.constant 0 : index
      %18 = vector.load %arg4[%c0_7, %c0_8] : memref<128x128xi8, #tpu.memory_space<vmem>>, vector<128x128xi8>
      %19 = arith.sitofp %18 : vector<128x128xi8> to vector<128x128xf32>
      %cst = arith.constant dense<0.000000e+00> : vector<128x128xf32>
      %20 = tpu.matmul %19, %16, %cst {dimension_numbers = #tpu.dot_dimension_numbers<[1], [0], [0], [1], [0, 0, 1, 1], [], []>} : vector<128x128xf32>, vector<128x128xf32>, vector<128x128xf32> -> vector<128x128xf32>
      %21 = arith.addf %17, %20 : vector<128x128xf32>
      %c0_9 = arith.constant 0 : index
      %c0_10 = arith.constant 0 : index
      %22 = vector.load %arg11[%c0_9, %c0_10] : memref<128x128xf32, #tpu.memory_space<vmem>>, vector<128x128xf32>
      tpu.vector_store %arg11[%c0_9, %c0_10], %21 {strides = array<i32>} : memref<128x128xf32, #tpu.memory_space<vmem>>, vector<128x128xf32>,
    } else {
    }
    %c0_i32_3 = arith.constant 0 : i32
    %10 = arith.cmpi eq, %arg1, %c0_i32_3 : i32
    %11 = arith.extui %10 : i1 to i32
    %c0_i32_4 = arith.constant 0 : i32
    %12 = arith.cmpi ne, %11, %c0_i32_4 : i32
    scf.if %12 {
      %c0 = arith.constant 0 : index
      %c0_5 = arith.constant 0 : index
      %13 = vector.load %arg11[%c0, %c0_5] : memref<128x128xf32, #tpu.memory_space<vmem>>, vector<128x128xf32>
      %c0_6 = arith.constant 0 : index
      %c0_7 = arith.constant 0 : index
      %14 = vector.load %arg9[%c0_6, %c0_7] : memref<128x1xf32, #tpu.memory_space<vmem>>, vector<128x1xf32>
      %15 = vector.broadcast %14 : vector<128x1xf32> to vector<128x128xf32>
      %16 = arith.mulf %13, %15 : vector<128x128xf32>
      %c0_8 = arith.constant 0 : index
      %c0_9 = arith.constant 0 : index
      %17 = vector.load %arg6[%c0_8, %c0_9] : memref<128x128xf32, #tpu.memory_space<vmem>>, vector<128x128xf32>
      %cst = arith.constant dense<0.000000e+00> : vector<128x128xf32>
      %18 = tpu.matmul %16, %17, %cst {dimension_numbers = #tpu.dot_dimension_numbers<[1], [0], [0], [1], [0, 0, 1, 1], [], []>} : vector<128x128xf32>, vector<128x128xf32>, vector<128x128xf32> -> vector<128x128xf32>
      %c0_10 = arith.constant 0 : index
      %c0_11 = arith.constant 0 : index
      %19 = vector.load %arg7[%c0_10, %c0_11] : memref<1x128xf32, #tpu.memory_space<vmem>>, vector<1x128xf32>
      %20 = vector.broadcast %19 : vector<1x128xf32> to vector<128x128xf32>
      %21 = arith.addf %18, %20 : vector<128x128xf32>
      %cst_12 = arith.constant 0.000000e+00 : f32
      %22 = vector.broadcast %cst_12 : f32 to vector<128x128xf32>
      %23 = arith.maximumf %21, %22 : vector<128x128xf32>
      %c0_13 = arith.constant 0 : index
      %c0_14 = arith.constant 0 : index
      %24 = vector.load %arg8[%c0_13, %c0_14] : memref<8x128xf32, #tpu.memory_space<vmem>>, vector<8x128xf32>
      %cst_15 = arith.constant dense<0.000000e+00> : vector<8x128xf32>
      %25 = tpu.matmul %24, %23, %cst_15 {dimension_numbers = #tpu.dot_dimension_numbers<[1], [0], [0], [1], [0, 0, 1, 1], [], []>} : vector<8x128xf32>, vector<128x128xf32>, vector<8x128xf32> -> vector<8x128xf32>
      %c0_16 = arith.constant 0 : index
      %c0_17 = arith.constant 0 : index
      %c0_18 = arith.constant 0 : index
      %26 = vector.load %arg10[%c0_16, %c0_17, %c0_18] : memref<1x8x128xf32, #tpu.memory_space<vmem>>, vector<1x8x128xf32>
      %27 = vector.shape_cast %26 : vector<1x8x128xf32> to vector<8x128xf32>
      %28 = vector.shape_cast %25 : vector<8x128xf32> to vector<1x8x128xf32>
      tpu.vector_store %arg10[%c0_16, %c0_17, %c0_18], %28 {strides = array<i32>} : memref<1x8x128xf32, #tpu.memory_space<vmem>>, vector<1x8x128xf32>,
    } else {
    }
    return
  }
  func.func @transform_0(%arg0: i32, %arg1: i32, %arg2: memref<1xi32, #tpu.memory_space<smem>>, %arg3: memref<1xi32, #tpu.memory_space<smem>>) -> (i32, i32) {
    %c1_i32 = arith.constant 1 : i32
    %0 = arith.muli %arg0, %c1_i32 : i32
    %1 = arith.addi %0, %arg1 : i32
    %2 = arith.index_cast %1 : i32 to index
    %3 = memref.load %arg3[%2] : memref<1xi32, #tpu.memory_space<smem>>
    %c0_i32 = arith.constant 0 : i32
    return %arg0, %3 : i32, i32
  }
  func.func @transform_1(%arg0: i32, %arg1: i32, %arg2: memref<1xi32, #tpu.memory_space<smem>>, %arg3: memref<1xi32, #tpu.memory_space<smem>>) -> (i32, i32) {
    %c0_i32 = arith.constant 0 : i32
    %c0_i32_0 = arith.constant 0 : i32
    %c0_i32_1 = arith.constant 0 : i32
    return %c0_i32, %c0_i32_0 : i32, i32
  }
  func.func @transform_2(%arg0: i32, %arg1: i32, %arg2: memref<1xi32, #tpu.memory_space<smem>>, %arg3: memref<1xi32, #tpu.memory_space<smem>>) -> (i32, i32) {
    %c0_i32 = arith.constant 0 : i32
    %c0_i32_0 = arith.constant 0 : i32
    %c0_i32_1 = arith.constant 0 : i32
    return %c0_i32, %c0_i32_0 : i32, i32
  }
  func.func @transform_3(%arg0: i32, %arg1: i32, %arg2: memref<1xi32, #tpu.memory_space<smem>>, %arg3: memref<1xi32, #tpu.memory_space<smem>>) -> (i32, i32) {
    %c0_i32 = arith.constant 0 : i32
    %c0_i32_0 = arith.constant 0 : i32
    %c0_i32_1 = arith.constant 0 : i32
    return %c0_i32, %c0_i32_0 : i32, i32
  }
  func.func @transform_4(%arg0: i32, %arg1: i32, %arg2: memref<1xi32, #tpu.memory_space<smem>>, %arg3: memref<1xi32, #tpu.memory_space<smem>>) -> (i32, i32) {
    %c0_i32 = arith.constant 0 : i32
    %c0_i32_0 = arith.constant 0 : i32
    return %c0_i32, %arg0 : i32, i32
  }
  func.func @transform_5(%arg0: i32, %arg1: i32, %arg2: memref<1xi32, #tpu.memory_space<smem>>, %arg3: memref<1xi32, #tpu.memory_space<smem>>) -> (i32, i32) {
    %c0_i32 = arith.constant 0 : i32
    %c0_i32_0 = arith.constant 0 : i32
    return %arg0, %c0_i32 : i32, i32
  }
  func.func @transform_6(%arg0: i32, %arg1: i32, %arg2: memref<1xi32, #tpu.memory_space<smem>>, %arg3: memref<1xi32, #tpu.memory_space<smem>>) -> (i32, i32, i32) {
    %c0_i32 = arith.constant 0 : i32
    %c0_i32_0 = arith.constant 0 : i32
    %c0_i32_1 = arith.constant 0 : i32
    return %arg0, %c0_i32, %c0_i32_0 : i32, i32, i32
  }
}

</mosaic_0001>

<llo_original>
// kernel: tpu_custom_call.1
$region0: #{tpu_custom_call.1}
  #allocation0 [shape = 'u32[]', space=smem, size = 0x4, offset = 0x4, fixed_abs, tag = 'smem constant byte address 0x4 - core index']
  #allocation1 [shape = 'u32[144,128]{1,0:T(1,128)}', space=vmem, size = 0x12000, scoped, tag = 'internal scratch']
  #allocation2 [shape = 'f32[128,128]{1,0:T(8,128)}', space=vmem, size = 0x10000, scoped, tag = 'scratch operand']
  #allocation3 [shape = 's32[1]{0}', space=sflag, size = 0x4, scoped, tag = 'scoped memory for tpu_custom_call.1']
  #allocation4 [shape = 's32[1]{0:T(128)S(6)}', space=smem, size = 0x200, scoped, tag = 'prefetched SMEM operand 0']
  #allocation5 [shape = 's32[1]{0:T(128)S(6)}', space=smem, size = 0x200, scoped, tag = 'prefetched SMEM operand 1']
  %s0 = inlined_call_operand.<no memory space> [shape: s32[1], index: 0, kind: input, shape index: {}]
  %s1 = inlined_call_operand.<no memory space> [shape: s32[1], index: 1, kind: input, shape index: {}]
  %s2 = inlined_call_operand.hbm [shape: s8[128,128], index: 2, kind: input, shape index: {}]
  %s3 = inlined_call_operand.vmem [shape: f32[128,128], index: 3, kind: input, shape index: {}]
  %s4 = inlined_call_operand.hbm [shape: f32[128,128], index: 4, kind: input, shape index: {}]
  %s5 = inlined_call_operand.vmem [shape: f32[1,128], index: 5, kind: input, shape index: {}]
  %s6 = inlined_call_operand.vmem [shape: f32[8,128], index: 6, kind: input, shape index: {}]
  %s7 = inlined_call_operand.vmem [shape: f32[128,1], index: 7, kind: input, shape index: {}]
  %s8 = inlined_call_operand.hbm [shape: f32[1,8,128], index: 8, kind: output, shape index: {}]
  %s9 = sld [smem:[#allocation0]]
  $region54: #{tpu_custom_call.1} parent=0
    _
  %s11 = ssub.s32 1, %s9
  %s12 = scalar_select 0, %s11, %s9
  %13 = sst [smem:[#allocation4]] %s0
  %14 = sst [smem:[#allocation5]] %s1
  $region1: #{tpu_custom_call.1} parent=0
    #allocation6 [shape = 'u8[16384]{0}', space=vmem, size = 0x4000, scoped, tag = 'input window, operand 2, single buffered']
    #allocation7 [shape = 's32[1]{0}', space=sflag, size = 0x4, scoped, tag = 'scoped memory for tpu_custom_call.1']
    #allocation8 [shape = 's32[1]{0}', space=sflag, size = 0x4, scoped, tag = 'scoped memory for tpu_custom_call.1']
    #allocation9 [shape = 'u8[65536]{0}', space=vmem, size = 0x10000, scoped, tag = 'input window, operand 4, single buffered']
    #allocation10 [shape = 's32[1]{0}', space=sflag, size = 0x4, scoped, tag = 'scoped memory for tpu_custom_call.1']
    #allocation11 [shape = 'u8[4096]{0}', space=vmem, size = 0x1000, scoped, tag = 'output window, operand 0, single buffered']
    %15 = vsyncpa [#allocation7], 0
    %16 = vsyncpa [#allocation10], 0
    %17 = vsyncpa [#allocation8], 0
    // Predicated region
    $region2: #{tpu_custom_call.1} parent=1 // pred_check
      _
    $region3: #{tpu_custom_call.1} parent=1 // pred_check_branch
      %19 = sbr.rel (0) target = $region5
    $region4: #{tpu_custom_call.1} parent=1 // pred_region
      %s20 = sadd.s32 0, 0
      %s21 = sld [smem:[#allocation5 + %s20]]
      %s23 = ssub.s32 512, 512
      %24 = vsyncadd [#allocation7], %s23
      %s25 = smul.addr %s21, 128
      %s26 = scalar_lea.hbm %s2, %s25
      %s27 = sshll.u32 [#allocation6], 4
      %s28 = int_to_ptr.vmem [resolvable:$true] %s27
      %33 = dma.hbm_to_vmem [thread:$0]  %s26, 512, %s28, [#allocation7], 128, 128, 8
    $region5: #{tpu_custom_call.1} parent=1 // pred_fallthru
      _
    // Predicated region
    $region6: #{tpu_custom_call.1} parent=1 // pred_check
      _
    $region7: #{tpu_custom_call.1} parent=1 // pred_check_branch
      %35 = sbr.rel (0) target = $region9
    $region8: #{tpu_custom_call.1} parent=1 // pred_region
      _
    $region9: #{tpu_custom_call.1} parent=1 // pred_fallthru
      _
    // Predicated region
    $region10: #{tpu_custom_call.1} parent=1 // pred_check
      _
    $region11: #{tpu_custom_call.1} parent=1 // pred_check_branch
      %37 = sbr.rel (0) target = $region13
    $region12: #{tpu_custom_call.1} parent=1 // pred_region
      %s39 = ssub.s32 2048, 2048
      %40 = vsyncadd [#allocation10], %s39
      %s41 = sshll.u32 [#allocation9], 4
      %s42 = int_to_ptr.vmem [resolvable:$true] %s41
      %47 = dma.hbm_to_vmem [thread:$0]  %s4, 2048, %s42, [#allocation10], 128, 128, 8
    $region13: #{tpu_custom_call.1} parent=1 // pred_fallthru
      _
    // Predicated region
    $region14: #{tpu_custom_call.1} parent=1 // pred_check
      _
    $region15: #{tpu_custom_call.1} parent=1 // pred_check_branch
      %49 = sbr.rel (0) target = $region17
    $region16: #{tpu_custom_call.1} parent=1 // pred_region
      _
    $region17: #{tpu_custom_call.1} parent=1 // pred_fallthru
      _
    // Predicated region
    $region18: #{tpu_custom_call.1} parent=1 // pred_check
      _
    $region19: #{tpu_custom_call.1} parent=1 // pred_check_branch
      %51 = sbr.rel (0) target = $region21
    $region20: #{tpu_custom_call.1} parent=1 // pred_region
      _
    $region21: #{tpu_custom_call.1} parent=1 // pred_fallthru
      _
    // Predicated region
    $region22: #{tpu_custom_call.1} parent=1 // pred_check
      _
    $region23: #{tpu_custom_call.1} parent=1 // pred_check_branch
      %53 = sbr.rel (0) target = $region25
    $region24: #{tpu_custom_call.1} parent=1 // pred_region
      _
    $region25: #{tpu_custom_call.1} parent=1 // pred_fallthru
      _
    // Predicated region
    $region26: #{tpu_custom_call.1} parent=1 // pred_check
      _
    $region27: #{tpu_custom_call.1} parent=1 // pred_check_branch
      %55 = sbr.rel (0) target = $region29
    $region28: #{tpu_custom_call.1} parent=1 // pred_region
      %56 = dma.done [#allocation7], 512
    $region29: #{tpu_custom_call.1} parent=1 // pred_fallthru
      _
    // Predicated region
    $region30: #{tpu_custom_call.1} parent=1 // pred_check
      _
    $region31: #{tpu_custom_call.1} parent=1 // pred_check_branch
      %58 = sbr.rel (0) target = $region33
    $region32: #{tpu_custom_call.1} parent=1 // pred_region
      %59 = dma.done [#allocation10], 2048
    $region33: #{tpu_custom_call.1} parent=1 // pred_fallthru
      _
    %s60 = sadd.s32 0, 0
    %s61 = sld [smem:[#allocation5 + %s60]]
    %p62 = scmp.eq.s32.totalorder 0, 0
    // Predicated region
    $region34: #{tpu_custom_call.1} parent=1 // pred_check
      %p63 = pneg %p62
    $region35: #{tpu_custom_call.1} parent=1 // pred_check_branch
      %65 = sbr.rel (%p63) target = $region37
    $region36: #{tpu_custom_call.1} parent=1 // pred_region
      %66 = vst [vmem:[#allocation2] sm:$0xff] 0.0
      %67 = vst [vmem:[#allocation2 + $0x8] sm:$0xff] 0.0
      %68 = vst [vmem:[#allocation2 + $0x10] sm:$0xff] 0.0
      %69 = vst [vmem:[#allocation2 + $0x18] sm:$0xff] 0.0
      %70 = vst [vmem:[#allocation2 + $0x20] sm:$0xff] 0.0
      %71 = vst [vmem:[#allocation2 + $0x28] sm:$0xff] 0.0
      %72 = vst [vmem:[#allocation2 + $0x30] sm:$0xff] 0.0
      %73 = vst [vmem:[#allocation2 + $0x38] sm:$0xff] 0.0
      %74 = vst [vmem:[#allocation2 + $0x40] sm:$0xff] 0.0
      %75 = vst [vmem:[#allocation2 + $0x48] sm:$0xff] 0.0
      %76 = vst [vmem:[#allocation2 + $0x50] sm:$0xff] 0.0
      %77 = vst [vmem:[#allocation2 + $0x58] sm:$0xff] 0.0
      %78 = vst [vmem:[#allocation2 + $0x60] sm:$0xff] 0.0
      %79 = vst [vmem:[#allocation2 + $0x68] sm:$0xff] 0.0
      %80 = vst [vmem:[#allocation2 + $0x70] sm:$0xff] 0.0
      %81 = vst [vmem:[#allocation2 + $0x78] sm:$0xff] 0.0
    $region37: #{tpu_custom_call.1} parent=1 // pred_fallthru
      _
    %s82 = sadd.s32 0, 0
    %s83 = sld [smem:[#allocation4 + %s82]]
    %p84 = scmp.ne.s32.totalorder %s83, 0
    // Predicated region
    $region38: #{tpu_custom_call.1} parent=1 // pred_check
      %p85 = pneg %p84
    $region39: #{tpu_custom_call.1} parent=1 // pred_check_branch
      %87 = sbr.rel (%p85) target = $region41
    $region40: #{tpu_custom_call.1} parent=1 // pred_region
      %s88 = smul.u32 0, 128
      %s89 = scalar_lea.vmem %s3, %s88
      %v90 = vld [vmem:[%s89] sm:$0xff]
      %v91 = vld [vmem:[%s89 + $0x8] sm:$0xff]
      %v92 = vld [vmem:[%s89 + $0x10] sm:$0xff]
      %v93 = vld [vmem:[%s89 + $0x18] sm:$0xff]
      %v94 = vld [vmem:[%s89 + $0x20] sm:$0xff]
      %v95 = vld [vmem:[%s89 + $0x28] sm:$0xff]
      %v96 = vld [vmem:[%s89 + $0x30] sm:$0xff]
      %v97 = vld [vmem:[%s89 + $0x38] sm:$0xff]
      %v98 = vld [vmem:[%s89 + $0x40] sm:$0xff]
      %v99 = vld [vmem:[%s89 + $0x48] sm:$0xff]
      %v100 = vld [vmem:[%s89 + $0x50] sm:$0xff]
      %v101 = vld [vmem:[%s89 + $0x58] sm:$0xff]
      %v102 = vld [vmem:[%s89 + $0x60] sm:$0xff]
      %v103 = vld [vmem:[%s89 + $0x68] sm:$0xff]
      %v104 = vld [vmem:[%s89 + $0x70] sm:$0xff]
      %v105 = vld [vmem:[%s89 + $0x78] sm:$0xff]
      %v106 = vld [vmem:[#allocation2] sm:$0xff]
      %v107 = vld [vmem:[#allocation2 + $0x8] sm:$0xff]
      %v108 = vld [vmem:[#allocation2 + $0x10] sm:$0xff]
      %v109 = vld [vmem:[#allocation2 + $0x18] sm:$0xff]
      %v110 = vld [vmem:[#allocation2 + $0x20] sm:$0xff]
      %v111 = vld [vmem:[#allocation2 + $0x28] sm:$0xff]
      %v112 = vld [vmem:[#allocation2 + $0x30] sm:$0xff]
      %v113 = vld [vmem:[#allocation2 + $0x38] sm:$0xff]
      %v114 = vld [vmem:[#allocation2 + $0x40] sm:$0xff]
      %v115 = vld [vmem:[#allocation2 + $0x48] sm:$0xff]
      %v116 = vld [vmem:[#allocation2 + $0x50] sm:$0xff]
      %v117 = vld [vmem:[#allocation2 + $0x58] sm:$0xff]
      %v118 = vld [vmem:[#allocation2 + $0x60] sm:$0xff]
      %v119 = vld [vmem:[#allocation2 + $0x68] sm:$0xff]
      %v120 = vld [vmem:[#allocation2 + $0x70] sm:$0xff]
      %v121 = vld [vmem:[#allocation2 + $0x78] sm:$0xff]
      %v122 = vld [vmem:[#allocation6] sm:$0xff]
      %v123 = vld [vmem:[#allocation6 + $0x8] sm:$0xff]
      %v124 = vld [vmem:[#allocation6 + $0x10] sm:$0xff]
      %v125 = vld [vmem:[#allocation6 + $0x18] sm:$0xff]
      %v126 = vunpack.c.0.s8 %v122
      %v127 = vunpack.c.1.s8 %v122
      %v128 = vunpack.c.2.s8 %v122
      %v129 = vunpack.c.3.s8 %v122
      %v130 = vunpack.c.0.s8 %v123
      %v131 = vunpack.c.1.s8 %v123
      %v132 = vunpack.c.2.s8 %v123
      %v133 = vunpack.c.3.s8 %v123
      %v134 = vunpack.c.0.s8 %v124
      %v135 = vunpack.c.1.s8 %v124
      %v136 = vunpack.c.2.s8 %v124
      %v137 = vunpack.c.3.s8 %v124
      %v138 = vunpack.c.0.s8 %v125
      %v139 = vunpack.c.1.s8 %v125
      %v140 = vunpack.c.2.s8 %v125
      %v141 = vunpack.c.3.s8 %v125
      %v142 = vcvt.s32.f32 %v126
      %v143 = vcvt.s32.f32 %v127
      %v144 = vcvt.s32.f32 %v128
      %v145 = vcvt.s32.f32 %v129
      %v146 = vcvt.s32.f32 %v130
      %v147 = vcvt.s32.f32 %v131
      %v148 = vcvt.s32.f32 %v132
      %v149 = vcvt.s32.f32 %v133
      %v150 = vcvt.s32.f32 %v134
      %v151 = vcvt.s32.f32 %v135
      %v152 = vcvt.s32.f32 %v136
      %v153 = vcvt.s32.f32 %v137
      %v154 = vcvt.s32.f32 %v138
      %v155 = vcvt.s32.f32 %v139
      %v156 = vcvt.s32.f32 %v140
      %v157 = vcvt.s32.f32 %v141
      %158 = vmatprep.subr.mxu0 0.0
      %159 = vmatpush1.msra.mxu0 %v105
      %160 = vmatprep.subr.mxu0 0.0
      %161 = vmatpush1.msra.mxu0 %v104
      %162 = vmatprep.subr.mxu0 0.0
      %163 = vmatpush1.msra.mxu0 %v103
      %164 = vmatprep.subr.mxu0 0.0
      %165 = vmatpush1.msra.mxu0 %v102
      %166 = vmatprep.subr.mxu0 0.0
      %167 = vmatpush1.msra.mxu0 %v101
      %168 = vmatprep.subr.mxu0 0.0
      %169 = vmatpush1.msra.mxu0 %v100
      %170 = vmatprep.subr.mxu0 0.0
      %171 = vmatpush1.msra.mxu0 %v99
      %172 = vmatprep.subr.mxu0 0.0
      %173 = vmatpush1.msra.mxu0 %v98
      %174 = vmatprep.subr.mxu0 0.0
      %175 = vmatpush1.msra.mxu0 %v97
      %176 = vmatprep.subr.mxu0 0.0
      %177 = vmatpush1.msra.mxu0 %v96
      %178 = vmatprep.subr.mxu0 0.0
      %179 = vmatpush1.msra.mxu0 %v95
      %180 = vmatprep.subr.mxu0 0.0
      %181 = vmatpush1.msra.mxu0 %v94
      %182 = vmatprep.subr.mxu0 0.0
      %183 = vmatpush1.msra.mxu0 %v93
      %184 = vmatprep.subr.mxu0 0.0
      %185 = vmatpush1.msra.mxu0 %v92
      %186 = vmatprep.subr.mxu0 0.0
      %187 = vmatpush1.msra.mxu0 %v91
      %188 = vmatprep.subr.mxu0 0.0
      %189 = vmatpush1.msra.mxu0 %v90
      %190 = vmatprep.subr.mxu0 0.0
      %191 = vmatpush2.msra.mxu0 0.0
      %192 = vmatprep.subr.mxu0 0.0
      %193 = vmatpush2.msra.mxu0 0.0
      %194 = vmatprep.subr.mxu0 0.0
      %195 = vmatpush2.msra.mxu0 0.0
      %196 = vmatprep.subr.mxu0 0.0
      %197 = vmatpush2.msra.mxu0 0.0
      %198 = vmatprep.subr.mxu0 0.0
      %199 = vmatpush2.msra.mxu0 0.0
      %200 = vmatprep.subr.mxu0 0.0
      %201 = vmatpush2.msra.mxu0 0.0
      %202 = vmatprep.subr.mxu0 0.0
      %203 = vmatpush2.msra.mxu0 0.0
      %204 = vmatprep.subr.mxu0 0.0
      %205 = vmatpush2.msra.mxu0 0.0
      %206 = vmatprep.subr.mxu0 0.0
      %207 = vmatpush2.msra.mxu0 0.0
      %208 = vmatprep.subr.mxu0 0.0
      %209 = vmatpush2.msra.mxu0 0.0
      %210 = vmatprep.subr.mxu0 0.0
      %211 = vmatpush2.msra.mxu0 0.0
      %212 = vmatprep.subr.mxu0 0.0
      %213 = vmatpush2.msra.mxu0 0.0
      %214 = vmatprep.subr.mxu0 0.0
      %215 = vmatpush2.msra.mxu0 0.0
      %216 = vmatprep.subr.mxu0 0.0
      %217 = vmatpush2.msra.mxu0 0.0
      %218 = vmatprep.subr.mxu0 0.0
      %219 = vmatpush2.msra.mxu0 0.0
      %220 = vmatprep.subr.mxu0 0.0
      %221 = vmatpush2.msra.mxu0 0.0
      %222 = vmatprep.mubr.f32.mxu0 0.0
      %223 = vmatmul.mubr.f32.gmra.mxu0 %v142
      %v224 = vpop.f32.mrf.mxu0
      %v225 = vadd.f32 0.0, %v224
      %v226 = vpop.f32.mrf.mxu0
      %227 = vmatprep.mubr.f32.mxu0 0.0
      %228 = vmatmul.mubr.f32.gmra.mxu0 %v143
      %v229 = vpop.f32.mrf.mxu0
      %v230 = vadd.f32 0.0, %v229
      %v231 = vpop.f32.mrf.mxu0
      %232 = vmatprep.mubr.f32.mxu0 0.0
      %233 = vmatmul.mubr.f32.gmra.mxu0 %v144
      %v234 = vpop.f32.mrf.mxu0
      %v235 = vadd.f32 0.0, %v234
      %v236 = vpop.f32.mrf.mxu0
      %237 = vmatprep.mubr.f32.mxu0 0.0
      %238 = vmatmul.mubr.f32.gmra.mxu0 %v145
      %v239 = vpop.f32.mrf.mxu0
      %v240 = vadd.f32 0.0, %v239
      %v241 = vpop.f32.mrf.mxu0
      %242 = vmatprep.mubr.f32.mxu0 0.0
      %243 = vmatmul.mubr.f32.gmra.mxu0 %v146
      %v244 = vpop.f32.mrf.mxu0
      %v245 = vadd.f32 0.0, %v244
      %v246 = vpop.f32.mrf.mxu0
      %247 = vmatprep.mubr.f32.mxu0 0.0
      %248 = vmatmul.mubr.f32.gmra.mxu0 %v147
      %v249 = vpop.f32.mrf.mxu0
      %v250 = vadd.f32 0.0, %v249
      %v251 = vpop.f32.mrf.mxu0
      %252 = vmatprep.mubr.f32.mxu0 0.0
      %253 = vmatmul.mubr.f32.gmra.mxu0 %v148
      %v254 = vpop.f32.mrf.mxu0
      %v255 = vadd.f32 0.0, %v254
      %v256 = vpop.f32.mrf.mxu0
      %257 = vmatprep.mubr.f32.mxu0 0.0
      %258 = vmatmul.mubr.f32.gmra.mxu0 %v149
      %v259 = vpop.f32.mrf.mxu0
      %v260 = vadd.f32 0.0, %v259
      %v261 = vpop.f32.mrf.mxu0
      %262 = vmatprep.mubr.f32.mxu0 0.0
      %263 = vmatmul.mubr.f32.gmra.mxu0 %v150
      %v264 = vpop.f32.mrf.mxu0
      %v265 = vadd.f32 0.0, %v264
      %v266 = vpop.f32.mrf.mxu0
      %267 = vmatprep.mubr.f32.mxu0 0.0
      %268 = vmatmul.mubr.f32.gmra.mxu0 %v151
      %v269 = vpop.f32.mrf.mxu0
      %v270 = vadd.f32 0.0, %v269
      %v271 = vpop.f32.mrf.mxu0
      %272 = vmatprep.mubr.f32.mxu0 0.0
      %273 = vmatmul.mubr.f32.gmra.mxu0 %v152
      %v274 = vpop.f32.mrf.mxu0
      %v275 = vadd.f32 0.0, %v274
      %v276 = vpop.f32.mrf.mxu0
      %277 = vmatprep.mubr.f32.mxu0 0.0
      %278 = vmatmul.mubr.f32.gmra.mxu0 %v153
      %v279 = vpop.f32.mrf.mxu0
      %v280 = vadd.f32 0.0, %v279
      %v281 = vpop.f32.mrf.mxu0
      %282 = vmatprep.mubr.f32.mxu0 0.0
      %283 = vmatmul.mubr.f32.gmra.mxu0 %v154
      %v284 = vpop.f32.mrf.mxu0
      %v285 = vadd.f32 0.0, %v284
      %v286 = vpop.f32.mrf.mxu0
      %287 = vmatprep.mubr.f32.mxu0 0.0
      %288 = vmatmul.mubr.f32.gmra.mxu0 %v155
      %v289 = vpop.f32.mrf.mxu0
      %v290 = vadd.f32 0.0, %v289
      %v291 = vpop.f32.mrf.mxu0
      %292 = vmatprep.mubr.f32.mxu0 0.0
      %293 = vmatmul.mubr.f32.gmra.mxu0 %v156
      %v294 = vpop.f32.mrf.mxu0
      %v295 = vadd.f32 0.0, %v294
      %v296 = vpop.f32.mrf.mxu0
      %297 = vmatprep.mubr.f32.mxu0 0.0
      %298 = vmatmul.mubr.f32.gmra.mxu0 %v157
      %v299 = vpop.f32.mrf.mxu0
      %v300 = vadd.f32 0.0, %v299
      %v301 = vpop.f32.mrf.mxu0
      %302 = vdwg.mxu0
      %v303 = vadd.f32 %v106, %v225
      %v304 = vadd.f32 %v107, %v230
      %v305 = vadd.f32 %v108, %v235
      %v306 = vadd.f32 %v109, %v240
      %v307 = vadd.f32 %v110, %v245
      %v308 = vadd.f32 %v111, %v250
      %v309 = vadd.f32 %v112, %v255
      %v310 = vadd.f32 %v113, %v260
      %v311 = vadd.f32 %v114, %v265
      %v312 = vadd.f32 %v115, %v270
      %v313 = vadd.f32 %v116, %v275
      %v314 = vadd.f32 %v117, %v280
      %v315 = vadd.f32 %v118, %v285
      %v316 = vadd.f32 %v119, %v290
      %v317 = vadd.f32 %v120, %v295
      %v318 = vadd.f32 %v121, %v300
      %319 = vst [vmem:[#allocation2] sm:$0xff] %v303
      %320 = vst [vmem:[#allocation2 + $0x8] sm:$0xff] %v304
      %321 = vst [vmem:[#allocation2 + $0x10] sm:$0xff] %v305
      %322 = vst [vmem:[#allocation2 + $0x18] sm:$0xff] %v306
      %323 = vst [vmem:[#allocation2 + $0x20] sm:$0xff] %v307
      %324 = vst [vmem:[#allocation2 + $0x28] sm:$0xff] %v308
      %325 = vst [vmem:[#allocation2 + $0x30] sm:$0xff] %v309
      %326 = vst [vmem:[#allocation2 + $0x38] sm:$0xff] %v310
      %327 = vst [vmem:[#allocation2 + $0x40] sm:$0xff] %v311
      %328 = vst [vmem:[#allocation2 + $0x48] sm:$0xff] %v312
      %329 = vst [vmem:[#allocation2 + $0x50] sm:$0xff] %v313
      %330 = vst [vmem:[#allocation2 + $0x58] sm:$0xff] %v314
      %331 = vst [vmem:[#allocation2 + $0x60] sm:$0xff] %v315
      %332 = vst [vmem:[#allocation2 + $0x68] sm:$0xff] %v316
      %333 = vst [vmem:[#allocation2 + $0x70] sm:$0xff] %v317
      %334 = vst [vmem:[#allocation2 + $0x78] sm:$0xff] %v318
    $region41: #{tpu_custom_call.1} parent=1 // pred_fallthru
      _
    // Predicated region
    $region42: #{tpu_custom_call.1} parent=1 // pred_check
      %p335 = pneg %p62
    $region43: #{tpu_custom_call.1} parent=1 // pred_check_branch
      %337 = sbr.rel (%p335) target = $region45
    $region44: #{tpu_custom_call.1} parent=1 // pred_region
      %v338 = vld [vmem:[#allocation2] sm:$0xff]
      %v339 = vld [vmem:[#allocation2 + $0x8] sm:$0xff]
      %v340 = vld [vmem:[#allocation2 + $0x10] sm:$0xff]
      %v341 = vld [vmem:[#allocation2 + $0x18] sm:$0xff]
      %v342 = vld [vmem:[#allocation2 + $0x20] sm:$0xff]
      %v343 = vld [vmem:[#allocation2 + $0x28] sm:$0xff]
      %v344 = vld [vmem:[#allocation2 + $0x30] sm:$0xff]
      %v345 = vld [vmem:[#allocation2 + $0x38] sm:$0xff]
      %v346 = vld [vmem:[#allocation2 + $0x40] sm:$0xff]
      %v347 = vld [vmem:[#allocation2 + $0x48] sm:$0xff]
      %v348 = vld [vmem:[#allocation2 + $0x50] sm:$0xff]
      %v349 = vld [vmem:[#allocation2 + $0x58] sm:$0xff]
      %v350 = vld [vmem:[#allocation2 + $0x60] sm:$0xff]
      %v351 = vld [vmem:[#allocation2 + $0x68] sm:$0xff]
      %v352 = vld [vmem:[#allocation2 + $0x70] sm:$0xff]
      %v353 = vld [vmem:[#allocation2 + $0x78] sm:$0xff]
      %v354 = vld [vmem:[%s7] sm:$0xff]
      %v355 = vld [vmem:[%s7 + $0x8] sm:$0xff]
      %v356 = vld [vmem:[%s7 + $0x10] sm:$0xff]
      %v357 = vld [vmem:[%s7 + $0x18] sm:$0xff]
      %v358 = vld [vmem:[%s7 + $0x20] sm:$0xff]
      %v359 = vld [vmem:[%s7 + $0x28] sm:$0xff]
      %v360 = vld [vmem:[%s7 + $0x30] sm:$0xff]
      %v361 = vld [vmem:[%s7 + $0x38] sm:$0xff]
      %v362 = vld [vmem:[%s7 + $0x40] sm:$0xff]
      %v363 = vld [vmem:[%s7 + $0x48] sm:$0xff]
      %v364 = vld [vmem:[%s7 + $0x50] sm:$0xff]
      %v365 = vld [vmem:[%s7 + $0x58] sm:$0xff]
      %v366 = vld [vmem:[%s7 + $0x60] sm:$0xff]
      %v367 = vld [vmem:[%s7 + $0x68] sm:$0xff]
      %v368 = vld [vmem:[%s7 + $0x70] sm:$0xff]
      %v369 = vld [vmem:[%s7 + $0x78] sm:$0xff]
      %371 = vset.pattern.permute.xlu0 0
      %372 = vperm.xlu0 %371, %v354
      %v373 = vpop.permute.xlu0 %372
      %376 = vset.pattern.permute.xlu0 0
      %377 = vperm.xlu0 %376, %v355
      %v378 = vpop.permute.xlu0 %377
      %381 = vset.pattern.permute.xlu0 0
      %382 = vperm.xlu0 %381, %v356
      %v383 = vpop.permute.xlu0 %382
      %386 = vset.pattern.permute.xlu0 0
      %387 = vperm.xlu0 %386, %v357
      %v388 = vpop.permute.xlu0 %387
      %391 = vset.pattern.permute.xlu0 0
      %392 = vperm.xlu0 %391, %v358
      %v393 = vpop.permute.xlu0 %392
      %396 = vset.pattern.permute.xlu0 0
      %397 = vperm.xlu0 %396, %v359
      %v398 = vpop.permute.xlu0 %397
      %401 = vset.pattern.permute.xlu0 0
      %402 = vperm.xlu0 %401, %v360
      %v403 = vpop.permute.xlu0 %402
      %406 = vset.pattern.permute.xlu0 0
      %407 = vperm.xlu0 %406, %v361
      %v408 = vpop.permute.xlu0 %407
      %411 = vset.pattern.permute.xlu0 0
      %412 = vperm.xlu0 %411, %v362
      %v413 = vpop.permute.xlu0 %412
      %416 = vset.pattern.permute.xlu0 0
      %417 = vperm.xlu0 %416, %v363
      %v418 = vpop.permute.xlu0 %417
      %421 = vset.pattern.permute.xlu0 0
      %422 = vperm.xlu0 %421, %v364
      %v423 = vpop.permute.xlu0 %422
      %426 = vset.pattern.permute.xlu0 0
      %427 = vperm.xlu0 %426, %v365
      %v428 = vpop.permute.xlu0 %427
      %431 = vset.pattern.permute.xlu0 0
      %432 = vperm.xlu0 %431, %v366
      %v433 = vpop.permute.xlu0 %432
      %436 = vset.pattern.permute.xlu0 0
      %437 = vperm.xlu0 %436, %v367
      %v438 = vpop.permute.xlu0 %437
      %441 = vset.pattern.permute.xlu0 0
      %442 = vperm.xlu0 %441, %v368
      %v443 = vpop.permute.xlu0 %442
      %446 = vset.pattern.permute.xlu0 0
      %447 = vperm.xlu0 %446, %v369
      %v448 = vpop.permute.xlu0 %447
      %v450 = vmul.f32 %v338, %v373
      %v451 = vmul.f32 %v339, %v378
      %v452 = vmul.f32 %v340, %v383
      %v453 = vmul.f32 %v341, %v388
      %v454 = vmul.f32 %v342, %v393
      %v455 = vmul.f32 %v343, %v398
      %v456 = vmul.f32 %v344, %v403
      %v457 = vmul.f32 %v345, %v408
      %v458 = vmul.f32 %v346, %v413
      %v459 = vmul.f32 %v347, %v418
      %v460 = vmul.f32 %v348, %v423
      %v461 = vmul.f32 %v349, %v428
      %v462 = vmul.f32 %v350, %v433
      %v463 = vmul.f32 %v351, %v438
      %v464 = vmul.f32 %v352, %v443
      %v465 = vmul.f32 %v353, %v448
      %v466 = vld [vmem:[#allocation9] sm:$0xff]
      %v467 = vld [vmem:[#allocation9 + $0x8] sm:$0xff]
      %v468 = vld [vmem:[#allocation9 + $0x10] sm:$0xff]
      %v469 = vld [vmem:[#allocation9 + $0x18] sm:$0xff]
      %v470 = vld [vmem:[#allocation9 + $0x20] sm:$0xff]
      %v471 = vld [vmem:[#allocation9 + $0x28] sm:$0xff]
      %v472 = vld [vmem:[#allocation9 + $0x30] sm:$0xff]
      %v473 = vld [vmem:[#allocation9 + $0x38] sm:$0xff]
      %v474 = vld [vmem:[#allocation9 + $0x40] sm:$0xff]
      %v475 = vld [vmem:[#allocation9 + $0x48] sm:$0xff]
      %v476 = vld [vmem:[#allocation9 + $0x50] sm:$0xff]
      %v477 = vld [vmem:[#allocation9 + $0x58] sm:$0xff]
      %v478 = vld [vmem:[#allocation9 + $0x60] sm:$0xff]
      %v479 = vld [vmem:[#allocation9 + $0x68] sm:$0xff]
      %v480 = vld [vmem:[#allocation9 + $0x70] sm:$0xff]
      %v481 = vld [vmem:[#allocation9 + $0x78] sm:$0xff]
      %v482 = vld [vmem:[%s5] sm:$0x1]
      %v484 = vlaneseq
      %v485 = vshrl.u32 %v484, 7
      %v486 = vsub.s32 0, %v485
      %v487 = vrot.slane %v482, %v486
      %489 = vmatprep.subr.mxu0 0.0
      %490 = vmatpush1.msra.mxu0 %v481
      %491 = vmatprep.subr.mxu0 0.0
      %492 = vmatpush1.msra.mxu0 %v480
      %493 = vmatprep.subr.mxu0 0.0
      %494 = vmatpush1.msra.mxu0 %v479
      %495 = vmatprep.subr.mxu0 0.0
      %496 = vmatpush1.msra.mxu0 %v478
      %497 = vmatprep.subr.mxu0 0.0
      %498 = vmatpush1.msra.mxu0 %v477
      %499 = vmatprep.subr.mxu0 0.0
      %500 = vmatpush1.msra.mxu0 %v476
      %501 = vmatprep.subr.mxu0 0.0
      %502 = vmatpush1.msra.mxu0 %v475
      %503 = vmatprep.subr.mxu0 0.0
      %504 = vmatpush1.msra.mxu0 %v474
      %505 = vmatprep.subr.mxu0 0.0
      %506 = vmatpush1.msra.mxu0 %v473
      %507 = vmatprep.subr.mxu0 0.0
      %508 = vmatpush1.msra.mxu0 %v472
      %509 = vmatprep.subr.mxu0 0.0
      %510 = vmatpush1.msra.mxu0 %v471
      %511 = vmatprep.subr.mxu0 0.0
      %512 = vmatpush1.msra.mxu0 %v470
      %513 = vmatprep.subr.mxu0 0.0
      %514 = vmatpush1.msra.mxu0 %v469
      %515 = vmatprep.subr.mxu0 0.0
      %516 = vmatpush1.msra.mxu0 %v468
      %517 = vmatprep.subr.mxu0 0.0
      %518 = vmatpush1.msra.mxu0 %v467
      %519 = vmatprep.subr.mxu0 0.0
      %520 = vmatpush1.msra.mxu0 %v466
      %521 = vmatprep.subr.mxu0 0.0
      %522 = vmatpush2.msra.mxu0 0.0
      %523 = vmatprep.subr.mxu0 0.0
      %524 = vmatpush2.msra.mxu0 0.0
      %525 = vmatprep.subr.mxu0 0.0
      %526 = vmatpush2.msra.mxu0 0.0
      %527 = vmatprep.subr.mxu0 0.0
      %528 = vmatpush2.msra.mxu0 0.0
      %529 = vmatprep.subr.mxu0 0.0
      %530 = vmatpush2.msra.mxu0 0.0
      %531 = vmatprep.subr.mxu0 0.0
      %532 = vmatpush2.msra.mxu0 0.0
      %533 = vmatprep.subr.mxu0 0.0
      %534 = vmatpush2.msra.mxu0 0.0
      %535 = vmatprep.subr.mxu0 0.0
      %536 = vmatpush2.msra.mxu0 0.0
      %537 = vmatprep.subr.mxu0 0.0
      %538 = vmatpush2.msra.mxu0 0.0
      %539 = vmatprep.subr.mxu0 0.0
      %540 = vmatpush2.msra.mxu0 0.0
      %541 = vmatprep.subr.mxu0 0.0
      %542 = vmatpush2.msra.mxu0 0.0
      %543 = vmatprep.subr.mxu0 0.0
      %544 = vmatpush2.msra.mxu0 0.0
      %545 = vmatprep.subr.mxu0 0.0
      %546 = vmatpush2.msra.mxu0 0.0
      %547 = vmatprep.subr.mxu0 0.0
      %548 = vmatpush2.msra.mxu0 0.0
      %549 = vmatprep.subr.mxu0 0.0
      %550 = vmatpush2.msra.mxu0 0.0
      %551 = vmatprep.subr.mxu0 0.0
      %552 = vmatpush2.msra.mxu0 0.0
      %553 = vmatprep.mubr.f32.mxu0 0.0
      %554 = vmatmul.mubr.f32.gmra.mxu0 %v450
      %v555 = vpop.f32.mrf.mxu0
      %v556 = vadd.f32 %v487, %v555
      %v557 = vpop.f32.mrf.mxu0
      %558 = vmatprep.mubr.f32.mxu0 0.0
      %559 = vmatmul.mubr.f32.gmra.mxu0 %v451
      %v560 = vpop.f32.mrf.mxu0
      %v561 = vadd.f32 %v487, %v560
      %v562 = vpop.f32.mrf.mxu0
      %563 = vmatprep.mubr.f32.mxu0 0.0
      %564 = vmatmul.mubr.f32.gmra.mxu0 %v452
      %v565 = vpop.f32.mrf.mxu0
      %v566 = vadd.f32 %v487, %v565
      %v567 = vpop.f32.mrf.mxu0
      %568 = vmatprep.mubr.f32.mxu0 0.0
      %569 = vmatmul.mubr.f32.gmra.mxu0 %v453
      %v570 = vpop.f32.mrf.mxu0
      %v571 = vadd.f32 %v487, %v570
      %v572 = vpop.f32.mrf.mxu0
      %573 = vmatprep.mubr.f32.mxu0 0.0
      %574 = vmatmul.mubr.f32.gmra.mxu0 %v454
      %v575 = vpop.f32.mrf.mxu0
      %v576 = vadd.f32 %v487, %v575
      %v577 = vpop.f32.mrf.mxu0
      %578 = vmatprep.mubr.f32.mxu0 0.0
      %579 = vmatmul.mubr.f32.gmra.mxu0 %v455
      %v580 = vpop.f32.mrf.mxu0
      %v581 = vadd.f32 %v487, %v580
      %v582 = vpop.f32.mrf.mxu0
      %583 = vmatprep.mubr.f32.mxu0 0.0
      %584 = vmatmul.mubr.f32.gmra.mxu0 %v456
      %v585 = vpop.f32.mrf.mxu0
      %v586 = vadd.f32 %v487, %v585
      %v587 = vpop.f32.mrf.mxu0
      %588 = vmatprep.mubr.f32.mxu0 0.0
      %589 = vmatmul.mubr.f32.gmra.mxu0 %v457
      %v590 = vpop.f32.mrf.mxu0
      %v591 = vadd.f32 %v487, %v590
      %v592 = vpop.f32.mrf.mxu0
      %593 = vmatprep.mubr.f32.mxu0 0.0
      %594 = vmatmul.mubr.f32.gmra.mxu0 %v458
      %v595 = vpop.f32.mrf.mxu0
      %v596 = vadd.f32 %v487, %v595
      %v597 = vpop.f32.mrf.mxu0
      %598 = vmatprep.mubr.f32.mxu0 0.0
      %599 = vmatmul.mubr.f32.gmra.mxu0 %v459
      %v600 = vpop.f32.mrf.mxu0
      %v601 = vadd.f32 %v487, %v600
      %v602 = vpop.f32.mrf.mxu0
      %603 = vmatprep.mubr.f32.mxu0 0.0
      %604 = vmatmul.mubr.f32.gmra.mxu0 %v460
      %v605 = vpop.f32.mrf.mxu0
      %v606 = vadd.f32 %v487, %v605
      %v607 = vpop.f32.mrf.mxu0
      %608 = vmatprep.mubr.f32.mxu0 0.0
      %609 = vmatmul.mubr.f32.gmra.mxu0 %v461
      %v610 = vpop.f32.mrf.mxu0
      %v611 = vadd.f32 %v487, %v610
      %v612 = vpop.f32.mrf.mxu0
      %613 = vmatprep.mubr.f32.mxu0 0.0
      %614 = vmatmul.mubr.f32.gmra.mxu0 %v462
      %v615 = vpop.f32.mrf.mxu0
      %v616 = vadd.f32 %v487, %v615
      %v617 = vpop.f32.mrf.mxu0
      %618 = vmatprep.mubr.f32.mxu0 0.0
      %619 = vmatmul.mubr.f32.gmra.mxu0 %v463
      %v620 = vpop.f32.mrf.mxu0
      %v621 = vadd.f32 %v487, %v620
      %v622 = vpop.f32.mrf.mxu0
      %623 = vmatprep.mubr.f32.mxu0 0.0
      %624 = vmatmul.mubr.f32.gmra.mxu0 %v464
      %v625 = vpop.f32.mrf.mxu0
      %v626 = vadd.f32 %v487, %v625
      %v627 = vpop.f32.mrf.mxu0
      %628 = vmatprep.mubr.f32.mxu0 0.0
      %629 = vmatmul.mubr.f32.gmra.mxu0 %v465
      %v630 = vpop.f32.mrf.mxu0
      %v631 = vadd.f32 %v487, %v630
      %v632 = vpop.f32.mrf.mxu0
      %633 = vdwg.mxu0
      %v634 = vmax.f32 %v556, 0.0
      %v635 = vmax.f32 %v561, 0.0
      %v636 = vmax.f32 %v566, 0.0
      %v637 = vmax.f32 %v571, 0.0
      %v638 = vmax.f32 %v576, 0.0
      %v639 = vmax.f32 %v581, 0.0
      %v640 = vmax.f32 %v586, 0.0
      %v641 = vmax.f32 %v591, 0.0
      %v642 = vmax.f32 %v596, 0.0
      %v643 = vmax.f32 %v601, 0.0
      %v644 = vmax.f32 %v606, 0.0
      %v645 = vmax.f32 %v611, 0.0
      %v646 = vmax.f32 %v616, 0.0
      %v647 = vmax.f32 %v621, 0.0
      %v648 = vmax.f32 %v626, 0.0
      %v649 = vmax.f32 %v631, 0.0
      %v650 = vld [vmem:[%s6] sm:$0xff]
      %651 = vmatprep.subr.mxu0 0.0
      %652 = vmatpush1.msra.mxu0 %v649
      %653 = vmatprep.subr.mxu0 0.0
      %654 = vmatpush1.msra.mxu0 %v648
      %655 = vmatprep.subr.mxu0 0.0
      %656 = vmatpush1.msra.mxu0 %v647
      %657 = vmatprep.subr.mxu0 0.0
      %658 = vmatpush1.msra.mxu0 %v646
      %659 = vmatprep.subr.mxu0 0.0
      %660 = vmatpush1.msra.mxu0 %v645
      %661 = vmatprep.subr.mxu0 0.0
      %662 = vmatpush1.msra.mxu0 %v644
      %663 = vmatprep.subr.mxu0 0.0
      %664 = vmatpush1.msra.mxu0 %v643
      %665 = vmatprep.subr.mxu0 0.0
      %666 = vmatpush1.msra.mxu0 %v642
      %667 = vmatprep.subr.mxu0 0.0
      %668 = vmatpush1.msra.mxu0 %v641
      %669 = vmatprep.subr.mxu0 0.0
      %670 = vmatpush1.msra.mxu0 %v640
      %671 = vmatprep.subr.mxu0 0.0
      %672 = vmatpush1.msra.mxu0 %v639
      %673 = vmatprep.subr.mxu0 0.0
      %674 = vmatpush1.msra.mxu0 %v638
      %675 = vmatprep.subr.mxu0 0.0
      %676 = vmatpush1.msra.mxu0 %v637
      %677 = vmatprep.subr.mxu0 0.0
      %678 = vmatpush1.msra.mxu0 %v636
      %679 = vmatprep.subr.mxu0 0.0
      %680 = vmatpush1.msra.mxu0 %v635
      %681 = vmatprep.subr.mxu0 0.0
      %682 = vmatpush1.msra.mxu0 %v634
      %683 = vmatprep.subr.mxu0 0.0
      %684 = vmatpush2.msra.mxu0 0.0
      %685 = vmatprep.subr.mxu0 0.0
      %686 = vmatpush2.msra.mxu0 0.0
      %687 = vmatprep.subr.mxu0 0.0
      %688 = vmatpush2.msra.mxu0 0.0
      %689 = vmatprep.subr.mxu0 0.0
      %690 = vmatpush2.msra.mxu0 0.0
      %691 = vmatprep.subr.mxu0 0.0
      %692 = vmatpush2.msra.mxu0 0.0
      %693 = vmatprep.subr.mxu0 0.0
      %694 = vmatpush2.msra.mxu0 0.0
      %695 = vmatprep.subr.mxu0 0.0
      %696 = vmatpush2.msra.mxu0 0.0
      %697 = vmatprep.subr.mxu0 0.0
      %698 = vmatpush2.msra.mxu0 0.0
      %699 = vmatprep.subr.mxu0 0.0
      %700 = vmatpush2.msra.mxu0 0.0
      %701 = vmatprep.subr.mxu0 0.0
      %702 = vmatpush2.msra.mxu0 0.0
      %703 = vmatprep.subr.mxu0 0.0
      %704 = vmatpush2.msra.mxu0 0.0
      %705 = vmatprep.subr.mxu0 0.0
      %706 = vmatpush2.msra.mxu0 0.0
      %707 = vmatprep.subr.mxu0 0.0
      %708 = vmatpush2.msra.mxu0 0.0
      %709 = vmatprep.subr.mxu0 0.0
      %710 = vmatpush2.msra.mxu0 0.0
      %711 = vmatprep.subr.mxu0 0.0
      %712 = vmatpush2.msra.mxu0 0.0
      %713 = vmatprep.subr.mxu0 0.0
      %714 = vmatpush2.msra.mxu0 0.0
      %715 = vmatprep.mubr.f32.mxu0 0.0
      %716 = vmatmul.mubr.f32.gmra.mxu0 %v650
      %v717 = vpop.f32.mrf.mxu0
      %v718 = vadd.f32 0.0, %v717
      %v719 = vpop.f32.mrf.mxu0
      %720 = vdwg.mxu0
      %721 = vst [vmem:[#allocation11] sm:$0xff] %v718
    $region45: #{tpu_custom_call.1} parent=1 // pred_fallthru
      _
    // Predicated region
    $region46: #{tpu_custom_call.1} parent=1 // pred_check
      _
    $region47: #{tpu_custom_call.1} parent=1 // pred_check_branch
      %723 = sbr.rel (0) target = $region49
    $region48: #{tpu_custom_call.1} parent=1 // pred_region
      %s725 = ssub.s32 128, 128
      %726 = vsyncadd [#allocation8], %s725
      %s728 = sshll.u32 [#allocation11], 4
      %s729 = int_to_ptr.vmem [resolvable:$true] %s728
      %731 = dma.vmem_to_hbm [thread:$0]  %s729, 128, %s8, [#allocation8]
    $region49: #{tpu_custom_call.1} parent=1 // pred_fallthru
      _
    // Predicated region
    $region50: #{tpu_custom_call.1} parent=1 // pred_check
      _
    $region51: #{tpu_custom_call.1} parent=1 // pred_check_branch
      %733 = sbr.rel (0) target = $region53
    $region52: #{tpu_custom_call.1} parent=1 // pred_region
      %734 = dma.done [#allocation8], 128
    $region53: #{tpu_custom_call.1} parent=1 // pred_fallthru
      _
    %735 = vsyncpa [#allocation7], 1
    %736 = vsyncpa [#allocation10], 1
    %737 = vsyncpa [#allocation8], 1

</llo_original>
